<compile_context>
chip_gen: v7x
topology: tpu7x:2x2x1
jax: 0.10.0
libtpu: 0.0.40
codegen_flags: <defaults>
</compile_context>

<pallas_src>
import functools

import jax
import jax.numpy as jnp
from jax.experimental import pallas as pl
from jax.experimental.pallas import tpu as pltpu


def lstm_kernel(lens_ref, x_ref, wih_ref, whh_ref, b_ref, hc_ref, *,
                n_steps, b_pad, hid, out_w):
    """Single-invocation LSTM over all timesteps.

    lens_ref : (Bp, 1)       int32  valid lengths (0 for padded batch rows)
    x_ref    : (T*Bp, E)     bf16   embedded inputs, time-major then batch
    wih_ref  : (E, 4H)       bf16   input->gates weights (transposed)
    whh_ref  : (H, 4H)       bf16   hidden->gates weights (transposed)
    b_ref    : (1, 4H)       f32    b_ih + b_hh
    hc_ref   : (Bp, out_w)   f32    output slab [h_n | c_n | lane padding]
    """
    H = hid
    Bp = b_pad

    # Prologue: one batched matmul for the input projection of ALL timesteps.
    gx = jnp.dot(x_ref[...], wih_ref[...],
                 preferred_element_type=jnp.float32) + b_ref[...]   # (T*Bp, 4H) f32

    lens = lens_ref[...]                                            # (Bp, 1) int32
    whh = whh_ref[...]                                              # (H, 4H) bf16

    h = jnp.zeros((Bp, H), jnp.float32)
    c = jnp.zeros((Bp, H), jnp.float32)

    # Fully-unrolled recurrence (T is a small static constant); all slices are
    # static and sublane-aligned (Bp is a multiple of 8).
    for t in range(n_steps):
        gates = gx[t * Bp:(t + 1) * Bp, :] + jnp.dot(
            h.astype(whh.dtype), whh,
            preferred_element_type=jnp.float32)                     # (Bp, 4H) f32

        i_g = jax.nn.sigmoid(gates[:, 0 * H:1 * H])
        f_g = jax.nn.sigmoid(gates[:, 1 * H:2 * H])
        g_g = jnp.tanh(gates[:, 2 * H:3 * H])
        o_g = jax.nn.sigmoid(gates[:, 3 * H:4 * H])

        c_new = f_g * c + i_g * g_g
        h_new = o_g * jnp.tanh(c_new)

        # Packed-sequence semantics: freeze state once past the sequence length.
        valid = t < lens                                            # (Bp, 1) bool
        h = jnp.where(valid, h_new, h)
        c = jnp.where(valid, c_new, c)

    # Single lane-dense store: [h | c | 0-pad] -> (Bp, out_w), out_w % 128 == 0.
    slab = jnp.concatenate([h, c], axis=-1)
    lane_pad = out_w - 2 * H
    if lane_pad:
        slab = jnp.concatenate(
            [slab, jnp.zeros((Bp, lane_pad), jnp.float32)], axis=-1)
    hc_ref[...] = slab


def encoder_forward(src, src_len, emb_table, w_ih, w_hh, b_ih, b_hh):
    """src: (B, T) int32 tokens; src_len: (B,) int32. Returns (h_n, c_n) of shape (1, B, H)."""
    B, T = src.shape
    E = emb_table.shape[1]
    H = w_hh.shape[1]

    if T == 0:  # guard: pack_padded_sequence would reject this; return zero state.
        z = jnp.zeros((1, B, H), jnp.float32)
        return z, z

    # Pad batch to a multiple of 8 sublanes; pad output lanes to a multiple of 128.
    Bp = -(-B // 8) * 8
    pad = Bp - B
    out_w = -(-(2 * H) // 128) * 128

    # Embedding lookup + (identity) dropout — gather glue, done in plain JAX.
    embedded = jnp.take(emb_table, src, axis=0)                     # (B, T, E)
    x_tbe = jnp.transpose(embedded, (1, 0, 2))                      # (T, B, E)
    if pad:
        x_tbe = jnp.pad(x_tbe, ((0, 0), (0, pad), (0, 0)))
    x_flat = x_tbe.reshape(T * Bp, E).astype(jnp.bfloat16)          # (T*Bp, E)

    lens = src_len.astype(jnp.int32).reshape(B, 1)
    if pad:
        lens = jnp.pad(lens, ((0, pad), (0, 0)))                    # padded rows: len 0

    wih_t = jnp.transpose(w_ih).astype(jnp.bfloat16)                # (E, 4H)
    whh_t = jnp.transpose(w_hh).astype(jnp.bfloat16)                # (H, 4H)
    bias = (b_ih + b_hh).reshape(1, 4 * H).astype(jnp.float32)      # (1, 4H)

    kernel = functools.partial(lstm_kernel, n_steps=T, b_pad=Bp, hid=H, out_w=out_w)

    hc = pl.pallas_call(
        kernel,
        out_shape=jax.ShapeDtypeStruct((Bp, out_w), jnp.float32),
        grid_spec=pltpu.PrefetchScalarGridSpec(
            num_scalar_prefetch=0,
            grid=(1,),
            in_specs=[
                pl.BlockSpec((Bp, 1), lambda i: (0, 0)),            # lens
                pl.BlockSpec((T * Bp, E), lambda i: (0, 0)),        # x (all timesteps)
                pl.BlockSpec((E, 4 * H), lambda i: (0, 0)),         # W_ih^T
                pl.BlockSpec((H, 4 * H), lambda i: (0, 0)),         # W_hh^T
                pl.BlockSpec((1, 4 * H), lambda i: (0, 0)),         # bias
            ],
            out_specs=pl.BlockSpec((Bp, out_w), lambda i: (0, 0)),  # [h | c | pad]
        ),
        compiler_params=pltpu.CompilerParams(
            dimension_semantics=("arbitrary",),
        ),
    )(lens, x_flat, wih_t, whh_t, bias)

    h = hc[:B, :H]
    c = hc[:B, H:2 * H]
    # nn.LSTM returns (n_layers, B, H)
    return h[None, :, :], c[None, :, :]


def encoder_reference(src, src_len, emb_table, w_ih, w_hh, b_ih, b_hh):
    """Pure-JAX f32 reference of the same forward pass (for a correctness check)."""
    B, T = src.shape
    H = w_hh.shape[1]
    x = jnp.take(emb_table, src, axis=0)                            # (B, T, E)
    h = jnp.zeros((B, H), jnp.float32)
    c = jnp.zeros((B, H), jnp.float32)
    for t in range(T):
        gates = x[:, t, :] @ w_ih.T + h @ w_hh.T + b_ih + b_hh
        i_g = jax.nn.sigmoid(gates[:, 0 * H:1 * H])
        f_g = jax.nn.sigmoid(gates[:, 1 * H:2 * H])
        g_g = jnp.tanh(gates[:, 2 * H:3 * H])
        o_g = jax.nn.sigmoid(gates[:, 3 * H:4 * H])
        c_new = f_g * c + i_g * g_g
        h_new = o_g * jnp.tanh(c_new)
        valid = (t < src_len)[:, None]
        h = jnp.where(valid, h_new, h)
        c = jnp.where(valid, c_new, c)
    return h[None], c[None]


if __name__ == "__main__":
    # Small shapes consistent with the module's forward.
    INPUT_DIM = 50   # vocab size
    EMB_DIM = 32
    HID_DIM = 32
    B, T = 2, 8

    key = jax.random.PRNGKey(0)
    k_emb, k_wih, k_whh, k_bih, k_bhh, k_src = jax.random.split(key, 6)

    # Deterministic parameter init (shapes follow nn.Embedding / nn.LSTM).
    emb_table = jax.random.normal(k_emb, (INPUT_DIM, EMB_DIM), jnp.float32) * 0.1
    w_ih = jax.random.normal(k_wih, (4 * HID_DIM, EMB_DIM), jnp.float32) * 0.1
    w_hh = jax.random.normal(k_whh, (4 * HID_DIM, HID_DIM), jnp.float32) * 0.1
    b_ih = jax.random.normal(k_bih, (4 * HID_DIM,), jnp.float32) * 0.1
    b_hh = jax.random.normal(k_bhh, (4 * HID_DIM,), jnp.float32) * 0.1

    # Example inputs: token ids and (unsorted) valid lengths.
    src = jax.random.randint(k_src, (B, T), 0, INPUT_DIM, dtype=jnp.int32)
    src_len = jnp.array([5, 8], dtype=jnp.int32)

    hidden, cell = encoder_forward(src, src_len, emb_table, w_ih, w_hh, b_ih, b_hh)
    jax.block_until_ready((hidden, cell))

    assert hidden.shape == (1, B, HID_DIM) and cell.shape == (1, B, HID_DIM)
    assert bool(jnp.all(jnp.isfinite(hidden))) and bool(jnp.all(jnp.isfinite(cell)))

    # Numerical check vs. pure-JAX f32 reference (loose tol: bf16 MXU operands).
    h_ref, c_ref = encoder_reference(src, src_len, emb_table, w_ih, w_hh, b_ih, b_hh)
    assert bool(jnp.allclose(hidden, h_ref, atol=3e-2)), "hidden mismatch vs reference"
    assert bool(jnp.allclose(cell, c_ref, atol=3e-2)), "cell mismatch vs reference"

    print("KERNEL_OK")
</pallas_src>

<mosaic_0001>
module attributes {stable_mosaic.version = 11 : i64} {
  func.func @lstm_kernel(%arg0: i32, %arg1: memref<8x1xi32, #tpu.memory_space<vmem>>, %arg2: memref<64x32xbf16, #tpu.memory_space<vmem>>, %arg3: memref<32x128xbf16, #tpu.memory_space<vmem>>, %arg4: memref<32x128xbf16, #tpu.memory_space<vmem>>, %arg5: memref<1x128xf32, #tpu.memory_space<vmem>>, %arg6: memref<8x128xf32, #tpu.memory_space<vmem>>) attributes {dimension_semantics = [#tpu.dimension_semantics<arbitrary>], iteration_bounds = array<i64: 1>, scalar_prefetch = 0 : i64, scratch_operands = 0 : i64, tpu.core_type = #tpu.core_type<tc>, window_params = [{pipeline_mode = #tpu.pipeline_mode<synchronous>, transform_indices = @transform_0, window_bounds = array<i64: 8, 1>}, {pipeline_mode = #tpu.pipeline_mode<synchronous>, transform_indices = @transform_1, window_bounds = array<i64: 64, 32>}, {pipeline_mode = #tpu.pipeline_mode<synchronous>, transform_indices = @transform_2, window_bounds = array<i64: 32, 128>}, {pipeline_mode = #tpu.pipeline_mode<synchronous>, transform_indices = @transform_3, window_bounds = array<i64: 32, 128>}, {pipeline_mode = #tpu.pipeline_mode<synchronous>, transform_indices = @transform_4, window_bounds = array<i64: 1, 128>}, {pipeline_mode = #tpu.pipeline_mode<synchronous>, transform_indices = @transform_5, window_bounds = array<i64: 8, 128>}]} {
    %c0 = arith.constant 0 : index
    %c0_0 = arith.constant 0 : index
    %0 = vector.load %arg2[%c0, %c0_0] : memref<64x32xbf16, #tpu.memory_space<vmem>>, vector<64x32xbf16>
    %c0_1 = arith.constant 0 : index
    %c0_2 = arith.constant 0 : index
    %1 = vector.load %arg3[%c0_1, %c0_2] : memref<32x128xbf16, #tpu.memory_space<vmem>>, vector<32x128xbf16>
    %cst = arith.constant dense<0.000000e+00> : vector<64x128xf32>
    %2 = tpu.matmul %0, %1, %cst {dimension_numbers = #tpu.dot_dimension_numbers<[1], [0], [0], [1], [0, 0, 1, 1], [], []>} : vector<64x32xbf16>, vector<32x128xbf16>, vector<64x128xf32> -> vector<64x128xf32>
    %c0_3 = arith.constant 0 : index
    %c0_4 = arith.constant 0 : index
    %3 = vector.load %arg5[%c0_3, %c0_4] : memref<1x128xf32, #tpu.memory_space<vmem>>, vector<1x128xf32>
    %4 = vector.broadcast %3 : vector<1x128xf32> to vector<64x128xf32>
    %5 = arith.addf %2, %4 : vector<64x128xf32>
    %c0_5 = arith.constant 0 : index
    %c0_6 = arith.constant 0 : index
    %6 = vector.load %arg1[%c0_5, %c0_6] : memref<8x1xi32, #tpu.memory_space<vmem>>, vector<8x1xi32>
    %c0_7 = arith.constant 0 : index
    %c0_8 = arith.constant 0 : index
    %7 = vector.load %arg4[%c0_7, %c0_8] : memref<32x128xbf16, #tpu.memory_space<vmem>>, vector<32x128xbf16>
    %cst_9 = arith.constant 0.000000e+00 : f32
    %8 = vector.broadcast %cst_9 : f32 to vector<8x32xf32>
    %cst_10 = arith.constant 0.000000e+00 : f32
    %9 = vector.broadcast %cst_10 : f32 to vector<8x32xf32>
    %10 = vector.extract_strided_slice %5 {offsets = [0, 0], sizes = [8, 128], strides = [1, 1]} : vector<64x128xf32> to vector<8x128xf32>
    %11 = arith.truncf %8 : vector<8x32xf32> to vector<8x32xbf16>
    %cst_11 = arith.constant dense<0.000000e+00> : vector<8x128xf32>
    %12 = tpu.matmul %11, %7, %cst_11 {dimension_numbers = #tpu.dot_dimension_numbers<[1], [0], [0], [1], [0, 0, 1, 1], [], []>} : vector<8x32xbf16>, vector<32x128xbf16>, vector<8x128xf32> -> vector<8x128xf32>
    %13 = arith.addf %10, %12 : vector<8x128xf32>
    %14 = vector.extract_strided_slice %13 {offsets = [0, 0], sizes = [8, 32], strides = [1, 1]} : vector<8x128xf32> to vector<8x32xf32>
    %15 = arith.negf %14 : vector<8x32xf32>
    %16 = math.exp %15 : vector<8x32xf32>
    %cst_12 = arith.constant 1.000000e+00 : f32
    %17 = vector.broadcast %cst_12 : f32 to vector<8x32xf32>
    %18 = arith.addf %17, %16 : vector<8x32xf32>
    %19 = arith.divf %17, %18 : vector<8x32xf32>
    %20 = vector.extract_strided_slice %13 {offsets = [0, 32], sizes = [8, 32], strides = [1, 1]} : vector<8x128xf32> to vector<8x32xf32>
    %21 = arith.negf %20 : vector<8x32xf32>
    %22 = math.exp %21 : vector<8x32xf32>
    %cst_13 = arith.constant 1.000000e+00 : f32
    %23 = vector.broadcast %cst_13 : f32 to vector<8x32xf32>
    %24 = arith.addf %23, %22 : vector<8x32xf32>
    %25 = arith.divf %23, %24 : vector<8x32xf32>
    %26 = vector.extract_strided_slice %13 {offsets = [0, 64], sizes = [8, 32], strides = [1, 1]} : vector<8x128xf32> to vector<8x32xf32>
    %27 = math.tanh %26 : vector<8x32xf32>
    %28 = vector.extract_strided_slice %13 {offsets = [0, 96], sizes = [8, 32], strides = [1, 1]} : vector<8x128xf32> to vector<8x32xf32>
    %29 = arith.negf %28 : vector<8x32xf32>
    %30 = math.exp %29 : vector<8x32xf32>
    %cst_14 = arith.constant 1.000000e+00 : f32
    %31 = vector.broadcast %cst_14 : f32 to vector<8x32xf32>
    %32 = arith.addf %31, %30 : vector<8x32xf32>
    %33 = arith.divf %31, %32 : vector<8x32xf32>
    %34 = arith.mulf %25, %9 : vector<8x32xf32>
    %35 = arith.mulf %19, %27 : vector<8x32xf32>
    %36 = arith.addf %34, %35 : vector<8x32xf32>
    %37 = math.tanh %36 : vector<8x32xf32>
    %38 = arith.mulf %33, %37 : vector<8x32xf32>
    %c0_i32 = arith.constant 0 : i32
    %39 = vector.broadcast %c0_i32 : i32 to vector<8x1xi32>
    %40 = arith.cmpi sgt, %6, %39 : vector<8x1xi32>
    %41 = vector.shape_cast %40 : vector<8x1xi1> to vector<8x1xi1>
    %42 = vector.broadcast %41 : vector<8x1xi1> to vector<8x32xi1>
    %43 = arith.select %42, %38, %8 : vector<8x32xi1>, vector<8x32xf32>
    %44 = vector.shape_cast %40 : vector<8x1xi1> to vector<8x1xi1>
    %45 = vector.broadcast %44 : vector<8x1xi1> to vector<8x32xi1>
    %46 = arith.select %45, %36, %9 : vector<8x32xi1>, vector<8x32xf32>
    %47 = vector.extract_strided_slice %5 {offsets = [8, 0], sizes = [8, 128], strides = [1, 1]} : vector<64x128xf32> to vector<8x128xf32>
    %48 = arith.truncf %43 : vector<8x32xf32> to vector<8x32xbf16>
    %cst_15 = arith.constant dense<0.000000e+00> : vector<8x128xf32>
    %49 = tpu.matmul %48, %7, %cst_15 {dimension_numbers = #tpu.dot_dimension_numbers<[1], [0], [0], [1], [0, 0, 1, 1], [], []>} : vector<8x32xbf16>, vector<32x128xbf16>, vector<8x128xf32> -> vector<8x128xf32>
    %50 = arith.addf %47, %49 : vector<8x128xf32>
    %51 = vector.extract_strided_slice %50 {offsets = [0, 0], sizes = [8, 32], strides = [1, 1]} : vector<8x128xf32> to vector<8x32xf32>
    %52 = arith.negf %51 : vector<8x32xf32>
    %53 = math.exp %52 : vector<8x32xf32>
    %cst_16 = arith.constant 1.000000e+00 : f32
    %54 = vector.broadcast %cst_16 : f32 to vector<8x32xf32>
    %55 = arith.addf %54, %53 : vector<8x32xf32>
    %56 = arith.divf %54, %55 : vector<8x32xf32>
    %57 = vector.extract_strided_slice %50 {offsets = [0, 32], sizes = [8, 32], strides = [1, 1]} : vector<8x128xf32> to vector<8x32xf32>
    %58 = arith.negf %57 : vector<8x32xf32>
    %59 = math.exp %58 : vector<8x32xf32>
    %cst_17 = arith.constant 1.000000e+00 : f32
    %60 = vector.broadcast %cst_17 : f32 to vector<8x32xf32>
    %61 = arith.addf %60, %59 : vector<8x32xf32>
    %62 = arith.divf %60, %61 : vector<8x32xf32>
    %63 = vector.extract_strided_slice %50 {offsets = [0, 64], sizes = [8, 32], strides = [1, 1]} : vector<8x128xf32> to vector<8x32xf32>
    %64 = math.tanh %63 : vector<8x32xf32>
    %65 = vector.extract_strided_slice %50 {offsets = [0, 96], sizes = [8, 32], strides = [1, 1]} : vector<8x128xf32> to vector<8x32xf32>
    %66 = arith.negf %65 : vector<8x32xf32>
    %67 = math.exp %66 : vector<8x32xf32>
    %cst_18 = arith.constant 1.000000e+00 : f32
    %68 = vector.broadcast %cst_18 : f32 to vector<8x32xf32>
    %69 = arith.addf %68, %67 : vector<8x32xf32>
    %70 = arith.divf %68, %69 : vector<8x32xf32>
    %71 = arith.mulf %62, %46 : vector<8x32xf32>
    %72 = arith.mulf %56, %64 : vector<8x32xf32>
    %73 = arith.addf %71, %72 : vector<8x32xf32>
    %74 = math.tanh %73 : vector<8x32xf32>
    %75 = arith.mulf %70, %74 : vector<8x32xf32>
    %c1_i32 = arith.constant 1 : i32
    %76 = vector.broadcast %c1_i32 : i32 to vector<8x1xi32>
    %77 = arith.cmpi sgt, %6, %76 : vector<8x1xi32>
    %78 = vector.shape_cast %77 : vector<8x1xi1> to vector<8x1xi1>
    %79 = vector.broadcast %78 : vector<8x1xi1> to vector<8x32xi1>
    %80 = arith.select %79, %75, %43 : vector<8x32xi1>, vector<8x32xf32>
    %81 = vector.shape_cast %77 : vector<8x1xi1> to vector<8x1xi1>
    %82 = vector.broadcast %81 : vector<8x1xi1> to vector<8x32xi1>
    %83 = arith.select %82, %73, %46 : vector<8x32xi1>, vector<8x32xf32>
    %84 = vector.extract_strided_slice %5 {offsets = [16, 0], sizes = [8, 128], strides = [1, 1]} : vector<64x128xf32> to vector<8x128xf32>
    %85 = arith.truncf %80 : vector<8x32xf32> to vector<8x32xbf16>
    %cst_19 = arith.constant dense<0.000000e+00> : vector<8x128xf32>
    %86 = tpu.matmul %85, %7, %cst_19 {dimension_numbers = #tpu.dot_dimension_numbers<[1], [0], [0], [1], [0, 0, 1, 1], [], []>} : vector<8x32xbf16>, vector<32x128xbf16>, vector<8x128xf32> -> vector<8x128xf32>
    %87 = arith.addf %84, %86 : vector<8x128xf32>
    %88 = vector.extract_strided_slice %87 {offsets = [0, 0], sizes = [8, 32], strides = [1, 1]} : vector<8x128xf32> to vector<8x32xf32>
    %89 = arith.negf %88 : vector<8x32xf32>
    %90 = math.exp %89 : vector<8x32xf32>
    %cst_20 = arith.constant 1.000000e+00 : f32
    %91 = vector.broadcast %cst_20 : f32 to vector<8x32xf32>
    %92 = arith.addf %91, %90 : vector<8x32xf32>
    %93 = arith.divf %91, %92 : vector<8x32xf32>
    %94 = vector.extract_strided_slice %87 {offsets = [0, 32], sizes = [8, 32], strides = [1, 1]} : vector<8x128xf32> to vector<8x32xf32>
    %95 = arith.negf %94 : vector<8x32xf32>
    %96 = math.exp %95 : vector<8x32xf32>
    %cst_21 = arith.constant 1.000000e+00 : f32
    %97 = vector.broadcast %cst_21 : f32 to vector<8x32xf32>
    %98 = arith.addf %97, %96 : vector<8x32xf32>
    %99 = arith.divf %97, %98 : vector<8x32xf32>
    %100 = vector.extract_strided_slice %87 {offsets = [0, 64], sizes = [8, 32], strides = [1, 1]} : vector<8x128xf32> to vector<8x32xf32>
    %101 = math.tanh %100 : vector<8x32xf32>
    %102 = vector.extract_strided_slice %87 {offsets = [0, 96], sizes = [8, 32], strides = [1, 1]} : vector<8x128xf32> to vector<8x32xf32>
    %103 = arith.negf %102 : vector<8x32xf32>
    %104 = math.exp %103 : vector<8x32xf32>
    %cst_22 = arith.constant 1.000000e+00 : f32
    %105 = vector.broadcast %cst_22 : f32 to vector<8x32xf32>
    %106 = arith.addf %105, %104 : vector<8x32xf32>
    %107 = arith.divf %105, %106 : vector<8x32xf32>
    %108 = arith.mulf %99, %83 : vector<8x32xf32>
    %109 = arith.mulf %93, %101 : vector<8x32xf32>
    %110 = arith.addf %108, %109 : vector<8x32xf32>
    %111 = math.tanh %110 : vector<8x32xf32>
    %112 = arith.mulf %107, %111 : vector<8x32xf32>
    %c2_i32 = arith.constant 2 : i32
    %113 = vector.broadcast %c2_i32 : i32 to vector<8x1xi32>
    %114 = arith.cmpi sgt, %6, %113 : vector<8x1xi32>
    %115 = vector.shape_cast %114 : vector<8x1xi1> to vector<8x1xi1>
    %116 = vector.broadcast %115 : vector<8x1xi1> to vector<8x32xi1>
    %117 = arith.select %116, %112, %80 : vector<8x32xi1>, vector<8x32xf32>
    %118 = vector.shape_cast %114 : vector<8x1xi1> to vector<8x1xi1>
    %119 = vector.broadcast %118 : vector<8x1xi1> to vector<8x32xi1>
    %120 = arith.select %119, %110, %83 : vector<8x32xi1>, vector<8x32xf32>
    %121 = vector.extract_strided_slice %5 {offsets = [24, 0], sizes = [8, 128], strides = [1, 1]} : vector<64x128xf32> to vector<8x128xf32>
    %122 = arith.truncf %117 : vector<8x32xf32> to vector<8x32xbf16>
    %cst_23 = arith.constant dense<0.000000e+00> : vector<8x128xf32>
    %123 = tpu.matmul %122, %7, %cst_23 {dimension_numbers = #tpu.dot_dimension_numbers<[1], [0], [0], [1], [0, 0, 1, 1], [], []>} : vector<8x32xbf16>, vector<32x128xbf16>, vector<8x128xf32> -> vector<8x128xf32>
    %124 = arith.addf %121, %123 : vector<8x128xf32>
    %125 = vector.extract_strided_slice %124 {offsets = [0, 0], sizes = [8, 32], strides = [1, 1]} : vector<8x128xf32> to vector<8x32xf32>
    %126 = arith.negf %125 : vector<8x32xf32>
    %127 = math.exp %126 : vector<8x32xf32>
    %cst_24 = arith.constant 1.000000e+00 : f32
    %128 = vector.broadcast %cst_24 : f32 to vector<8x32xf32>
    %129 = arith.addf %128, %127 : vector<8x32xf32>
    %130 = arith.divf %128, %129 : vector<8x32xf32>
    %131 = vector.extract_strided_slice %124 {offsets = [0, 32], sizes = [8, 32], strides = [1, 1]} : vector<8x128xf32> to vector<8x32xf32>
    %132 = arith.negf %131 : vector<8x32xf32>
    %133 = math.exp %132 : vector<8x32xf32>
    %cst_25 = arith.constant 1.000000e+00 : f32
    %134 = vector.broadcast %cst_25 : f32 to vector<8x32xf32>
    %135 = arith.addf %134, %133 : vector<8x32xf32>
    %136 = arith.divf %134, %135 : vector<8x32xf32>
    %137 = vector.extract_strided_slice %124 {offsets = [0, 64], sizes = [8, 32], strides = [1, 1]} : vector<8x128xf32> to vector<8x32xf32>
    %138 = math.tanh %137 : vector<8x32xf32>
    %139 = vector.extract_strided_slice %124 {offsets = [0, 96], sizes = [8, 32], strides = [1, 1]} : vector<8x128xf32> to vector<8x32xf32>
    %140 = arith.negf %139 : vector<8x32xf32>
    %141 = math.exp %140 : vector<8x32xf32>
    %cst_26 = arith.constant 1.000000e+00 : f32
    %142 = vector.broadcast %cst_26 : f32 to vector<8x32xf32>
    %143 = arith.addf %142, %141 : vector<8x32xf32>
    %144 = arith.divf %142, %143 : vector<8x32xf32>
    %145 = arith.mulf %136, %120 : vector<8x32xf32>
    %146 = arith.mulf %130, %138 : vector<8x32xf32>
    %147 = arith.addf %145, %146 : vector<8x32xf32>
    %148 = math.tanh %147 : vector<8x32xf32>
    %149 = arith.mulf %144, %148 : vector<8x32xf32>
    %c3_i32 = arith.constant 3 : i32
    %150 = vector.broadcast %c3_i32 : i32 to vector<8x1xi32>
    %151 = arith.cmpi sgt, %6, %150 : vector<8x1xi32>
    %152 = vector.shape_cast %151 : vector<8x1xi1> to vector<8x1xi1>
    %153 = vector.broadcast %152 : vector<8x1xi1> to vector<8x32xi1>
    %154 = arith.select %153, %149, %117 : vector<8x32xi1>, vector<8x32xf32>
    %155 = vector.shape_cast %151 : vector<8x1xi1> to vector<8x1xi1>
    %156 = vector.broadcast %155 : vector<8x1xi1> to vector<8x32xi1>
    %157 = arith.select %156, %147, %120 : vector<8x32xi1>, vector<8x32xf32>
    %158 = vector.extract_strided_slice %5 {offsets = [32, 0], sizes = [8, 128], strides = [1, 1]} : vector<64x128xf32> to vector<8x128xf32>
    %159 = arith.truncf %154 : vector<8x32xf32> to vector<8x32xbf16>
    %cst_27 = arith.constant dense<0.000000e+00> : vector<8x128xf32>
    %160 = tpu.matmul %159, %7, %cst_27 {dimension_numbers = #tpu.dot_dimension_numbers<[1], [0], [0], [1], [0, 0, 1, 1], [], []>} : vector<8x32xbf16>, vector<32x128xbf16>, vector<8x128xf32> -> vector<8x128xf32>
    %161 = arith.addf %158, %160 : vector<8x128xf32>
    %162 = vector.extract_strided_slice %161 {offsets = [0, 0], sizes = [8, 32], strides = [1, 1]} : vector<8x128xf32> to vector<8x32xf32>
    %163 = arith.negf %162 : vector<8x32xf32>
    %164 = math.exp %163 : vector<8x32xf32>
    %cst_28 = arith.constant 1.000000e+00 : f32
    %165 = vector.broadcast %cst_28 : f32 to vector<8x32xf32>
    %166 = arith.addf %165, %164 : vector<8x32xf32>
    %167 = arith.divf %165, %166 : vector<8x32xf32>
    %168 = vector.extract_strided_slice %161 {offsets = [0, 32], sizes = [8, 32], strides = [1, 1]} : vector<8x128xf32> to vector<8x32xf32>
    %169 = arith.negf %168 : vector<8x32xf32>
    %170 = math.exp %169 : vector<8x32xf32>
    %cst_29 = arith.constant 1.000000e+00 : f32
    %171 = vector.broadcast %cst_29 : f32 to vector<8x32xf32>
    %172 = arith.addf %171, %170 : vector<8x32xf32>
    %173 = arith.divf %171, %172 : vector<8x32xf32>
    %174 = vector.extract_strided_slice %161 {offsets = [0, 64], sizes = [8, 32], strides = [1, 1]} : vector<8x128xf32> to vector<8x32xf32>
    %175 = math.tanh %174 : vector<8x32xf32>
    %176 = vector.extract_strided_slice %161 {offsets = [0, 96], sizes = [8, 32], strides = [1, 1]} : vector<8x128xf32> to vector<8x32xf32>
    %177 = arith.negf %176 : vector<8x32xf32>
    %178 = math.exp %177 : vector<8x32xf32>
    %cst_30 = arith.constant 1.000000e+00 : f32
    %179 = vector.broadcast %cst_30 : f32 to vector<8x32xf32>
    %180 = arith.addf %179, %178 : vector<8x32xf32>
    %181 = arith.divf %179, %180 : vector<8x32xf32>
    %182 = arith.mulf %173, %157 : vector<8x32xf32>
    %183 = arith.mulf %167, %175 : vector<8x32xf32>
    %184 = arith.addf %182, %183 : vector<8x32xf32>
    %185 = math.tanh %184 : vector<8x32xf32>
    %186 = arith.mulf %181, %185 : vector<8x32xf32>
    %c4_i32 = arith.constant 4 : i32
    %187 = vector.broadcast %c4_i32 : i32 to vector<8x1xi32>
    %188 = arith.cmpi sgt, %6, %187 : vector<8x1xi32>
    %189 = vector.shape_cast %188 : vector<8x1xi1> to vector<8x1xi1>
    %190 = vector.broadcast %189 : vector<8x1xi1> to vector<8x32xi1>
    %191 = arith.select %190, %186, %154 : vector<8x32xi1>, vector<8x32xf32>
    %192 = vector.shape_cast %188 : vector<8x1xi1> to vector<8x1xi1>
    %193 = vector.broadcast %192 : vector<8x1xi1> to vector<8x32xi1>
    %194 = arith.select %193, %184, %157 : vector<8x32xi1>, vector<8x32xf32>
    %195 = vector.extract_strided_slice %5 {offsets = [40, 0], sizes = [8, 128], strides = [1, 1]} : vector<64x128xf32> to vector<8x128xf32>
    %196 = arith.truncf %191 : vector<8x32xf32> to vector<8x32xbf16>
    %cst_31 = arith.constant dense<0.000000e+00> : vector<8x128xf32>
    %197 = tpu.matmul %196, %7, %cst_31 {dimension_numbers = #tpu.dot_dimension_numbers<[1], [0], [0], [1], [0, 0, 1, 1], [], []>} : vector<8x32xbf16>, vector<32x128xbf16>, vector<8x128xf32> -> vector<8x128xf32>
    %198 = arith.addf %195, %197 : vector<8x128xf32>
    %199 = vector.extract_strided_slice %198 {offsets = [0, 0], sizes = [8, 32], strides = [1, 1]} : vector<8x128xf32> to vector<8x32xf32>
    %200 = arith.negf %199 : vector<8x32xf32>
    %201 = math.exp %200 : vector<8x32xf32>
    %cst_32 = arith.constant 1.000000e+00 : f32
    %202 = vector.broadcast %cst_32 : f32 to vector<8x32xf32>
    %203 = arith.addf %202, %201 : vector<8x32xf32>
    %204 = arith.divf %202, %203 : vector<8x32xf32>
    %205 = vector.extract_strided_slice %198 {offsets = [0, 32], sizes = [8, 32], strides = [1, 1]} : vector<8x128xf32> to vector<8x32xf32>
    %206 = arith.negf %205 : vector<8x32xf32>
    %207 = math.exp %206 : vector<8x32xf32>
    %cst_33 = arith.constant 1.000000e+00 : f32
    %208 = vector.broadcast %cst_33 : f32 to vector<8x32xf32>
    %209 = arith.addf %208, %207 : vector<8x32xf32>
    %210 = arith.divf %208, %209 : vector<8x32xf32>
    %211 = vector.extract_strided_slice %198 {offsets = [0, 64], sizes = [8, 32], strides = [1, 1]} : vector<8x128xf32> to vector<8x32xf32>
    %212 = math.tanh %211 : vector<8x32xf32>
    %213 = vector.extract_strided_slice %198 {offsets = [0, 96], sizes = [8, 32], strides = [1, 1]} : vector<8x128xf32> to vector<8x32xf32>
    %214 = arith.negf %213 : vector<8x32xf32>
    %215 = math.exp %214 : vector<8x32xf32>
    %cst_34 = arith.constant 1.000000e+00 : f32
    %216 = vector.broadcast %cst_34 : f32 to vector<8x32xf32>
    %217 = arith.addf %216, %215 : vector<8x32xf32>
    %218 = arith.divf %216, %217 : vector<8x32xf32>
    %219 = arith.mulf %210, %194 : vector<8x32xf32>
    %220 = arith.mulf %204, %212 : vector<8x32xf32>
    %221 = arith.addf %219, %220 : vector<8x32xf32>
    %222 = math.tanh %221 : vector<8x32xf32>
    %223 = arith.mulf %218, %222 : vector<8x32xf32>
    %c5_i32 = arith.constant 5 : i32
    %224 = vector.broadcast %c5_i32 : i32 to vector<8x1xi32>
    %225 = arith.cmpi sgt, %6, %224 : vector<8x1xi32>
    %226 = vector.shape_cast %225 : vector<8x1xi1> to vector<8x1xi1>
    %227 = vector.broadcast %226 : vector<8x1xi1> to vector<8x32xi1>
    %228 = arith.select %227, %223, %191 : vector<8x32xi1>, vector<8x32xf32>
    %229 = vector.shape_cast %225 : vector<8x1xi1> to vector<8x1xi1>
    %230 = vector.broadcast %229 : vector<8x1xi1> to vector<8x32xi1>
    %231 = arith.select %230, %221, %194 : vector<8x32xi1>, vector<8x32xf32>
    %232 = vector.extract_strided_slice %5 {offsets = [48, 0], sizes = [8, 128], strides = [1, 1]} : vector<64x128xf32> to vector<8x128xf32>
    %233 = arith.truncf %228 : vector<8x32xf32> to vector<8x32xbf16>
    %cst_35 = arith.constant dense<0.000000e+00> : vector<8x128xf32>
    %234 = tpu.matmul %233, %7, %cst_35 {dimension_numbers = #tpu.dot_dimension_numbers<[1], [0], [0], [1], [0, 0, 1, 1], [], []>} : vector<8x32xbf16>, vector<32x128xbf16>, vector<8x128xf32> -> vector<8x128xf32>
    %235 = arith.addf %232, %234 : vector<8x128xf32>
    %236 = vector.extract_strided_slice %235 {offsets = [0, 0], sizes = [8, 32], strides = [1, 1]} : vector<8x128xf32> to vector<8x32xf32>
    %237 = arith.negf %236 : vector<8x32xf32>
    %238 = math.exp %237 : vector<8x32xf32>
    %cst_36 = arith.constant 1.000000e+00 : f32
    %239 = vector.broadcast %cst_36 : f32 to vector<8x32xf32>
    %240 = arith.addf %239, %238 : vector<8x32xf32>
    %241 = arith.divf %239, %240 : vector<8x32xf32>
    %242 = vector.extract_strided_slice %235 {offsets = [0, 32], sizes = [8, 32], strides = [1, 1]} : vector<8x128xf32> to vector<8x32xf32>
    %243 = arith.negf %242 : vector<8x32xf32>
    %244 = math.exp %243 : vector<8x32xf32>
    %cst_37 = arith.constant 1.000000e+00 : f32
    %245 = vector.broadcast %cst_37 : f32 to vector<8x32xf32>
    %246 = arith.addf %245, %244 : vector<8x32xf32>
    %247 = arith.divf %245, %246 : vector<8x32xf32>
    %248 = vector.extract_strided_slice %235 {offsets = [0, 64], sizes = [8, 32], strides = [1, 1]} : vector<8x128xf32> to vector<8x32xf32>
    %249 = math.tanh %248 : vector<8x32xf32>
    %250 = vector.extract_strided_slice %235 {offsets = [0, 96], sizes = [8, 32], strides = [1, 1]} : vector<8x128xf32> to vector<8x32xf32>
    %251 = arith.negf %250 : vector<8x32xf32>
    %252 = math.exp %251 : vector<8x32xf32>
    %cst_38 = arith.constant 1.000000e+00 : f32
    %253 = vector.broadcast %cst_38 : f32 to vector<8x32xf32>
    %254 = arith.addf %253, %252 : vector<8x32xf32>
    %255 = arith.divf %253, %254 : vector<8x32xf32>
    %256 = arith.mulf %247, %231 : vector<8x32xf32>
    %257 = arith.mulf %241, %249 : vector<8x32xf32>
    %258 = arith.addf %256, %257 : vector<8x32xf32>
    %259 = math.tanh %258 : vector<8x32xf32>
    %260 = arith.mulf %255, %259 : vector<8x32xf32>
    %c6_i32 = arith.constant 6 : i32
    %261 = vector.broadcast %c6_i32 : i32 to vector<8x1xi32>
    %262 = arith.cmpi sgt, %6, %261 : vector<8x1xi32>
    %263 = vector.shape_cast %262 : vector<8x1xi1> to vector<8x1xi1>
    %264 = vector.broadcast %263 : vector<8x1xi1> to vector<8x32xi1>
    %265 = arith.select %264, %260, %228 : vector<8x32xi1>, vector<8x32xf32>
    %266 = vector.shape_cast %262 : vector<8x1xi1> to vector<8x1xi1>
    %267 = vector.broadcast %266 : vector<8x1xi1> to vector<8x32xi1>
    %268 = arith.select %267, %258, %231 : vector<8x32xi1>, vector<8x32xf32>
    %269 = vector.extract_strided_slice %5 {offsets = [56, 0], sizes = [8, 128], strides = [1, 1]} : vector<64x128xf32> to vector<8x128xf32>
    %270 = arith.truncf %265 : vector<8x32xf32> to vector<8x32xbf16>
    %cst_39 = arith.constant dense<0.000000e+00> : vector<8x128xf32>
    %271 = tpu.matmul %270, %7, %cst_39 {dimension_numbers = #tpu.dot_dimension_numbers<[1], [0], [0], [1], [0, 0, 1, 1], [], []>} : vector<8x32xbf16>, vector<32x128xbf16>, vector<8x128xf32> -> vector<8x128xf32>
    %272 = arith.addf %269, %271 : vector<8x128xf32>
    %273 = vector.extract_strided_slice %272 {offsets = [0, 0], sizes = [8, 32], strides = [1, 1]} : vector<8x128xf32> to vector<8x32xf32>
    %274 = arith.negf %273 : vector<8x32xf32>
    %275 = math.exp %274 : vector<8x32xf32>
    %cst_40 = arith.constant 1.000000e+00 : f32
    %276 = vector.broadcast %cst_40 : f32 to vector<8x32xf32>
    %277 = arith.addf %276, %275 : vector<8x32xf32>
    %278 = arith.divf %276, %277 : vector<8x32xf32>
    %279 = vector.extract_strided_slice %272 {offsets = [0, 32], sizes = [8, 32], strides = [1, 1]} : vector<8x128xf32> to vector<8x32xf32>
    %280 = arith.negf %279 : vector<8x32xf32>
    %281 = math.exp %280 : vector<8x32xf32>
    %cst_41 = arith.constant 1.000000e+00 : f32
    %282 = vector.broadcast %cst_41 : f32 to vector<8x32xf32>
    %283 = arith.addf %282, %281 : vector<8x32xf32>
    %284 = arith.divf %282, %283 : vector<8x32xf32>
    %285 = vector.extract_strided_slice %272 {offsets = [0, 64], sizes = [8, 32], strides = [1, 1]} : vector<8x128xf32> to vector<8x32xf32>
    %286 = math.tanh %285 : vector<8x32xf32>
    %287 = vector.extract_strided_slice %272 {offsets = [0, 96], sizes = [8, 32], strides = [1, 1]} : vector<8x128xf32> to vector<8x32xf32>
    %288 = arith.negf %287 : vector<8x32xf32>
    %289 = math.exp %288 : vector<8x32xf32>
    %cst_42 = arith.constant 1.000000e+00 : f32
    %290 = vector.broadcast %cst_42 : f32 to vector<8x32xf32>
    %291 = arith.addf %290, %289 : vector<8x32xf32>
    %292 = arith.divf %290, %291 : vector<8x32xf32>
    %293 = arith.mulf %284, %268 : vector<8x32xf32>
    %294 = arith.mulf %278, %286 : vector<8x32xf32>
    %295 = arith.addf %293, %294 : vector<8x32xf32>
    %296 = math.tanh %295 : vector<8x32xf32>
    %297 = arith.mulf %292, %296 : vector<8x32xf32>
    %c7_i32 = arith.constant 7 : i32
    %298 = vector.broadcast %c7_i32 : i32 to vector<8x1xi32>
    %299 = arith.cmpi sgt, %6, %298 : vector<8x1xi32>
    %300 = vector.shape_cast %299 : vector<8x1xi1> to vector<8x1xi1>
    %301 = vector.broadcast %300 : vector<8x1xi1> to vector<8x32xi1>
    %302 = arith.select %301, %297, %265 : vector<8x32xi1>, vector<8x32xf32>
    %303 = vector.shape_cast %299 : vector<8x1xi1> to vector<8x1xi1>
    %304 = vector.broadcast %303 : vector<8x1xi1> to vector<8x32xi1>
    %305 = arith.select %304, %295, %268 : vector<8x32xi1>, vector<8x32xf32>
    %306 = tpu.concatenate %302, %305 in 1 : vector<8x32xf32>, vector<8x32xf32> -> vector<8x64xf32>
    %cst_43 = arith.constant 0.000000e+00 : f32
    %307 = vector.broadcast %cst_43 : f32 to vector<8x64xf32>
    %308 = tpu.concatenate %306, %307 in 1 : vector<8x64xf32>, vector<8x64xf32> -> vector<8x128xf32>
    %c0_44 = arith.constant 0 : index
    %c0_45 = arith.constant 0 : index
    %309 = vector.load %arg6[%c0_44, %c0_45] : memref<8x128xf32, #tpu.memory_space<vmem>>, vector<8x128xf32>
    tpu.vector_store %arg6[%c0_44, %c0_45], %308 {strides = array<i32>} : memref<8x128xf32, #tpu.memory_space<vmem>>, vector<8x128xf32>,
    return
  }
  func.func @transform_0(%arg0: i32) -> (i32, i32) {
    %c0_i32 = arith.constant 0 : i32
    %c0_i32_0 = arith.constant 0 : i32
    %c0_i32_1 = arith.constant 0 : i32
    return %c0_i32, %c0_i32_0 : i32, i32
  }
  func.func @transform_1(%arg0: i32) -> (i32, i32) {
    %c0_i32 = arith.constant 0 : i32
    %c0_i32_0 = arith.constant 0 : i32
    %c0_i32_1 = arith.constant 0 : i32
    return %c0_i32, %c0_i32_0 : i32, i32
  }
  func.func @transform_2(%arg0: i32) -> (i32, i32) {
    %c0_i32 = arith.constant 0 : i32
    %c0_i32_0 = arith.constant 0 : i32
    %c0_i32_1 = arith.constant 0 : i32
    return %c0_i32, %c0_i32_0 : i32, i32
  }
  func.func @transform_3(%arg0: i32) -> (i32, i32) {
    %c0_i32 = arith.constant 0 : i32
    %c0_i32_0 = arith.constant 0 : i32
    %c0_i32_1 = arith.constant 0 : i32
    return %c0_i32, %c0_i32_0 : i32, i32
  }
  func.func @transform_4(%arg0: i32) -> (i32, i32) {
    %c0_i32 = arith.constant 0 : i32
    %c0_i32_0 = arith.constant 0 : i32
    %c0_i32_1 = arith.constant 0 : i32
    return %c0_i32, %c0_i32_0 : i32, i32
  }
  func.func @transform_5(%arg0: i32) -> (i32, i32) {
    %c0_i32 = arith.constant 0 : i32
    %c0_i32_0 = arith.constant 0 : i32
    %c0_i32_1 = arith.constant 0 : i32
    return %c0_i32, %c0_i32_0 : i32, i32
  }
}

</mosaic_0001>

<llo_original>
// kernel: tpu_custom_call.1
$region0: #{tpu_custom_call.1}
  #allocation0 [shape = 'u32[]', space=smem, size = 0x4, offset = 0x4, fixed_abs, tag = 'smem constant byte address 0x4 - core index']
  #allocation1 [shape = 'u32[144,128]{1,0:T(1,128)}', space=vmem, size = 0x12000, scoped, tag = 'internal scratch']
  %s0 = inlined_call_operand.vmem [shape: s32[8,1], index: 0, kind: input, shape index: {}]
  %s1 = inlined_call_operand.vmem [shape: bf16[64,32], index: 1, kind: input, shape index: {}]
  %s2 = inlined_call_operand.vmem [shape: bf16[32,128], index: 2, kind: input, shape index: {}]
  %s3 = inlined_call_operand.vmem [shape: bf16[32,128], index: 3, kind: input, shape index: {}]
  %s4 = inlined_call_operand.vmem [shape: f32[1,128], index: 4, kind: input, shape index: {}]
  %s5 = inlined_call_operand.hbm [shape: f32[8,128], index: 5, kind: output, shape index: {}]
  %s6 = sld [smem:[#allocation0]]
  $region30: #{tpu_custom_call.1} parent=0
    _
  %s8 = ssub.s32 1, %s6
  %s9 = scalar_select 0, %s8, %s6
  $region1: #{tpu_custom_call.1} parent=0
    #allocation2 [shape = 'u8[4096]{0}', space=vmem, size = 0x1000, scoped, tag = 'output window, operand 0, single buffered']
    #allocation3 [shape = 's32[1]{0}', space=sflag, size = 0x4, scoped, tag = 'scoped memory for tpu_custom_call.1']
    %10 = vsyncpa [#allocation3], 0
    // Predicated region
    $region2: #{tpu_custom_call.1} parent=1 // pred_check
      _
    $region3: #{tpu_custom_call.1} parent=1 // pred_check_branch
      %12 = sbr.rel (0) target = $region5
    $region4: #{tpu_custom_call.1} parent=1 // pred_region
      _
    $region5: #{tpu_custom_call.1} parent=1 // pred_fallthru
      _
    // Predicated region
    $region6: #{tpu_custom_call.1} parent=1 // pred_check
      _
    $region7: #{tpu_custom_call.1} parent=1 // pred_check_branch
      %14 = sbr.rel (0) target = $region9
    $region8: #{tpu_custom_call.1} parent=1 // pred_region
      _
    $region9: #{tpu_custom_call.1} parent=1 // pred_fallthru
      _
    // Predicated region
    $region10: #{tpu_custom_call.1} parent=1 // pred_check
      _
    $region11: #{tpu_custom_call.1} parent=1 // pred_check_branch
      %16 = sbr.rel (0) target = $region13
    $region12: #{tpu_custom_call.1} parent=1 // pred_region
      _
    $region13: #{tpu_custom_call.1} parent=1 // pred_fallthru
      _
    // Predicated region
    $region14: #{tpu_custom_call.1} parent=1 // pred_check
      _
    $region15: #{tpu_custom_call.1} parent=1 // pred_check_branch
      %18 = sbr.rel (0) target = $region17
    $region16: #{tpu_custom_call.1} parent=1 // pred_region
      _
    $region17: #{tpu_custom_call.1} parent=1 // pred_fallthru
      _
    // Predicated region
    $region18: #{tpu_custom_call.1} parent=1 // pred_check
      _
    $region19: #{tpu_custom_call.1} parent=1 // pred_check_branch
      %20 = sbr.rel (0) target = $region21
    $region20: #{tpu_custom_call.1} parent=1 // pred_region
      _
    $region21: #{tpu_custom_call.1} parent=1 // pred_fallthru
      _
    %v22 = vld [vmem:[%s1] sm:$0xf]
    %v23 = vld [vmem:[%s1 + $0x4] sm:$0xf]
    %v24 = vld [vmem:[%s1 + $0x8] sm:$0xf]
    %v25 = vld [vmem:[%s1 + $0xc] sm:$0xf]
    %v26 = vld [vmem:[%s1 + $0x10] sm:$0xf]
    %v27 = vld [vmem:[%s1 + $0x14] sm:$0xf]
    %v28 = vld [vmem:[%s1 + $0x18] sm:$0xf]
    %v29 = vld [vmem:[%s1 + $0x1c] sm:$0xf]
    %v30 = vld [vmem:[%s2] sm:$0xf]
    %v31 = vld [vmem:[%s2 + $0x4] sm:$0xf]
    %v32 = vld [vmem:[%s2 + $0x8] sm:$0xf]
    %v33 = vld [vmem:[%s2 + $0xc] sm:$0xf]
    %v34 = vld [vmem:[%s4] sm:$0x1]
    %v36 = vlaneseq
    %v37 = vshrl.u32 %v36, 7
    %v38 = vsub.s32 0, %v37
    %v39 = vrot.slane %v34, %v38
    %v49 = vunpack.c.l.b16 %v22
    %v50 = vunpack.c.l.b16 %v23
    %v51 = vunpack.c.l.b16 %v24
    %v52 = vunpack.c.l.b16 %v25
    %v53 = vunpack.c.l.b16 %v26
    %v54 = vunpack.c.l.b16 %v27
    %v55 = vunpack.c.l.b16 %v28
    %v56 = vunpack.c.l.b16 %v29
    %v57 = vpack.c.b16 %v50, %v49
    %v58 = vpack.c.b16 %v52, %v51
    %v59 = vpack.c.b16 %v54, %v53
    %v60 = vpack.c.b16 %v56, %v55
    %v65 = vunpack.c.l.b16 %v30
    %v66 = vunpack.c.l.b16 %v31
    %v67 = vunpack.c.l.b16 %v32
    %v68 = vunpack.c.l.b16 %v33
    %v69 = vpack.c.b16 %v66, %v65
    %v70 = vpack.c.b16 %v68, %v67
    %vm73 = vcmask 261120
    %v75 = vsel %vm73, %v57, 0
    %v78 = vsel %vm73, %v58, 0
    %v81 = vsel %vm73, %v59, 0
    %v84 = vsel %vm73, %v60, 0
    %86 = vmatprep.subr.bf16.mxu0 0
    %87 = vmatpush1.bf16.msra.mxu0 %v69
    %88 = vmatprep.subr.bf16.mxu0 0
    %89 = vmatpush1.bf16.msra.mxu0 %v70
    %90 = vmatprep.subr.bf16.mxu0 0
    %91 = vmatpush1.bf16.msra.mxu0 0
    %92 = vmatprep.subr.bf16.mxu0 0
    %93 = vmatpush1.bf16.msra.mxu0 0
    %94 = vmatprep.subr.bf16.mxu0 0
    %95 = vmatpush1.bf16.msra.mxu0 0
    %96 = vmatprep.subr.bf16.mxu0 0
    %97 = vmatpush1.bf16.msra.mxu0 0
    %98 = vmatprep.subr.bf16.mxu0 0
    %99 = vmatpush1.bf16.msra.mxu0 0
    %100 = vmatprep.subr.bf16.mxu0 0
    %101 = vmatpush1.bf16.msra.mxu0 0
    %102 = vmatprep.subr.bf16.mxu0 0
    %103 = vmatpush1.bf16.msra.mxu0 0
    %104 = vmatprep.subr.bf16.mxu0 0
    %105 = vmatpush1.bf16.msra.mxu0 0
    %106 = vmatprep.subr.bf16.mxu0 0
    %107 = vmatpush1.bf16.msra.mxu0 0
    %108 = vmatprep.subr.bf16.mxu0 0
    %109 = vmatpush1.bf16.msra.mxu0 0
    %110 = vmatprep.subr.bf16.mxu0 0
    %111 = vmatpush1.bf16.msra.mxu0 0
    %112 = vmatprep.subr.bf16.mxu0 0
    %113 = vmatpush1.bf16.msra.mxu0 0
    %114 = vmatprep.subr.bf16.mxu0 0
    %115 = vmatpush1.bf16.msra.mxu0 0
    %116 = vmatprep.subr.bf16.mxu0 0
    %117 = vmatpush1.bf16.msra.mxu0 0
    %118 = vmatprep.mubr.bf16.mxu0 0
    %119 = vmatmul.mubr.bf16.gmra.mrb[0].mxu0 %v75
    %v120 = vpop.f32.mrb[0].mxu0
    %v121 = vadd.f32 %v39, %v120
    %v122 = vpop.f32.mrb[0].mxu0
    %v123 = vpop.f32.mrb[0].mxu0
    %v124 = vadd.f32 %v39, %v123
    %v125 = vpop.f32.mrb[0].mxu0
    %126 = vmatprep.mubr.bf16.mxu0 0
    %127 = vmatmul.mubr.bf16.gmra.mrb[0].mxu0 %v78
    %v128 = vpop.f32.mrb[0].mxu0
    %v129 = vadd.f32 %v39, %v128
    %v130 = vpop.f32.mrb[0].mxu0
    %v131 = vpop.f32.mrb[0].mxu0
    %v132 = vadd.f32 %v39, %v131
    %v133 = vpop.f32.mrb[0].mxu0
    %134 = vmatprep.mubr.bf16.mxu0 0
    %135 = vmatmul.mubr.bf16.gmra.mrb[0].mxu0 %v81
    %v136 = vpop.f32.mrb[0].mxu0
    %v137 = vadd.f32 %v39, %v136
    %v138 = vpop.f32.mrb[0].mxu0
    %v139 = vpop.f32.mrb[0].mxu0
    %v140 = vadd.f32 %v39, %v139
    %v141 = vpop.f32.mrb[0].mxu0
    %142 = vmatprep.mubr.bf16.mxu0 0
    %143 = vmatmul.mubr.bf16.gmra.mrb[0].mxu0 %v84
    %v144 = vpop.f32.mrb[0].mxu0
    %v145 = vadd.f32 %v39, %v144
    %v146 = vpop.f32.mrb[0].mxu0
    %v147 = vpop.f32.mrb[0].mxu0
    %v148 = vadd.f32 %v39, %v147
    %v149 = vpop.f32.mrb[0].mxu0
    %150 = vdwg.mxu0
    %v151 = vld [vmem:[%s0] sm:$0xff]
    %v152 = vld [vmem:[%s3] sm:$0xf]
    %v153 = vld [vmem:[%s3 + $0x4] sm:$0xf]
    %v154 = vld [vmem:[%s3 + $0x8] sm:$0xf]
    %v155 = vld [vmem:[%s3 + $0xc] sm:$0xf]
    %v160 = vunpack.c.l.b16 %v152
    %v161 = vunpack.c.l.b16 %v153
    %v162 = vunpack.c.l.b16 %v154
    %v163 = vunpack.c.l.b16 %v155
    %v164 = vpack.c.b16 %v161, %v160
    %v165 = vpack.c.b16 %v163, %v162
    %v169 = vsel %vm73, 0, 0
    %171 = vmatprep.subr.bf16.mxu0 0
    %172 = vmatpush1.bf16.msra.mxu0 %v164
    %173 = vmatprep.subr.bf16.mxu0 0
    %174 = vmatpush1.bf16.msra.mxu0 %v165
    %175 = vmatprep.subr.bf16.mxu0 0
    %176 = vmatpush1.bf16.msra.mxu0 0
    %177 = vmatprep.subr.bf16.mxu0 0
    %178 = vmatpush1.bf16.msra.mxu0 0
    %179 = vmatprep.subr.bf16.mxu0 0
    %180 = vmatpush1.bf16.msra.mxu0 0
    %181 = vmatprep.subr.bf16.mxu0 0
    %182 = vmatpush1.bf16.msra.mxu0 0
    %183 = vmatprep.subr.bf16.mxu0 0
    %184 = vmatpush1.bf16.msra.mxu0 0
    %185 = vmatprep.subr.bf16.mxu0 0
    %186 = vmatpush1.bf16.msra.mxu0 0
    %187 = vmatprep.subr.bf16.mxu0 0
    %188 = vmatpush1.bf16.msra.mxu0 0
    %189 = vmatprep.subr.bf16.mxu0 0
    %190 = vmatpush1.bf16.msra.mxu0 0
    %191 = vmatprep.subr.bf16.mxu0 0
    %192 = vmatpush1.bf16.msra.mxu0 0
    %193 = vmatprep.subr.bf16.mxu0 0
    %194 = vmatpush1.bf16.msra.mxu0 0
    %195 = vmatprep.subr.bf16.mxu0 0
    %196 = vmatpush1.bf16.msra.mxu0 0
    %197 = vmatprep.subr.bf16.mxu0 0
    %198 = vmatpush1.bf16.msra.mxu0 0
    %199 = vmatprep.subr.bf16.mxu0 0
    %200 = vmatpush1.bf16.msra.mxu0 0
    %201 = vmatprep.subr.bf16.mxu0 0
    %202 = vmatpush1.bf16.msra.mxu0 0
    %203 = vmatprep.mubr.bf16.mxu0 0
    %204 = vmatmul.mubr.bf16.gmra.mrb[0].mxu0 %v169
    %v205 = vpop.f32.mrb[0].mxu0
    %v206 = vadd.f32 0.0, %v205
    %v207 = vpop.f32.mrb[0].mxu0
    %v208 = vpop.f32.mrb[0].mxu0
    %v209 = vpop.f32.mrb[0].mxu0
    %210 = vdwg.mxu0
    %v211 = vadd.f32 %v121, %v206
    %v212 = vxor.u32 %v211, 2147483648
    %v213 = vmul.f32 %v212, 1.442695
    %v214 = vpow.pop %v213
    %v215 = vadd.f32 %v214, 1.0
    %v216 = vrcp.pop %v215
    %v217 = vmul.f32 1.0, %v216
    %v218 = vtanh.pop %v211
    %v219 = vmul.f32 %v217, 0.0
    %221 = vrot.lane.b32.xlu0 %v218, 64
    %v222 = vpop.permute.xlu0 %221
    %v224 = vmul.f32 %v217, %v222
    %226 = vrot.lane.b32.xlu0 %v224, 32
    %v227 = vpop.permute.xlu0 %226
    %v229 = vadd.f32 %v219, %v227
    %v230 = vtanh.pop %v229
    %232 = vrot.lane.b32.xlu0 %v230, 64
    %v233 = vpop.permute.xlu0 %232
    %v235 = vmul.f32 %v217, %v233
    %vm236 = vcmp.gt.s32.totalorder %v151, 0
    %v237 = vsel %vm236, 1, 0
    %238 = vset.pattern.permute.xlu0 0
    %239 = vperm.xlu0 %238, %v237
    %v240 = vpop.permute.xlu0 %239
    %vm241 = vcmp.eq.s32.totalorder %v240, 1
    %v242 = vsel %vm241, %v235, 0.0
    %v243 = vsel %vm241, %v229, 0.0
    %v244 = vpack.c.bf16 %v242, %v242
    %246 = vrot.lane.b32.xlu0 %v244, 32
    %v247 = vpop.permute.xlu0 %246
    %v249 = vsel %vm73, %v247, 0
    %251 = vmatprep.subr.bf16.mxu0 0
    %252 = vmatpush1.bf16.msra.mxu0 %v164
    %253 = vmatprep.subr.bf16.mxu0 0
    %254 = vmatpush1.bf16.msra.mxu0 %v165
    %255 = vmatprep.subr.bf16.mxu0 0
    %256 = vmatpush1.bf16.msra.mxu0 0
    %257 = vmatprep.subr.bf16.mxu0 0
    %258 = vmatpush1.bf16.msra.mxu0 0
    %259 = vmatprep.subr.bf16.mxu0 0
    %260 = vmatpush1.bf16.msra.mxu0 0
    %261 = vmatprep.subr.bf16.mxu0 0
    %262 = vmatpush1.bf16.msra.mxu0 0
    %263 = vmatprep.subr.bf16.mxu0 0
    %264 = vmatpush1.bf16.msra.mxu0 0
    %265 = vmatprep.subr.bf16.mxu0 0
    %266 = vmatpush1.bf16.msra.mxu0 0
    %267 = vmatprep.subr.bf16.mxu0 0
    %268 = vmatpush1.bf16.msra.mxu0 0
    %269 = vmatprep.subr.bf16.mxu0 0
    %270 = vmatpush1.bf16.msra.mxu0 0
    %271 = vmatprep.subr.bf16.mxu0 0
    %272 = vmatpush1.bf16.msra.mxu0 0
    %273 = vmatprep.subr.bf16.mxu0 0
    %274 = vmatpush1.bf16.msra.mxu0 0
    %275 = vmatprep.subr.bf16.mxu0 0
    %276 = vmatpush1.bf16.msra.mxu0 0
    %277 = vmatprep.subr.bf16.mxu0 0
    %278 = vmatpush1.bf16.msra.mxu0 0
    %279 = vmatprep.subr.bf16.mxu0 0
    %280 = vmatpush1.bf16.msra.mxu0 0
    %281 = vmatprep.subr.bf16.mxu0 0
    %282 = vmatpush1.bf16.msra.mxu0 0
    %283 = vmatprep.mubr.bf16.mxu0 0
    %284 = vmatmul.mubr.bf16.gmra.mrb[0].mxu0 %v249
    %v285 = vpop.f32.mrb[0].mxu0
    %v286 = vadd.f32 0.0, %v285
    %v287 = vpop.f32.mrb[0].mxu0
    %v288 = vpop.f32.mrb[0].mxu0
    %v289 = vpop.f32.mrb[0].mxu0
    %290 = vdwg.mxu0
    %v291 = vadd.f32 %v124, %v286
    %v292 = vxor.u32 %v291, 2147483648
    %v293 = vmul.f32 %v292, 1.442695
    %v294 = vpow.pop %v293
    %v295 = vadd.f32 %v294, 1.0
    %v296 = vrcp.pop %v295
    %v297 = vmul.f32 1.0, %v296
    %v298 = vtanh.pop %v291
    %v299 = vmul.f32 %v297, %v243
    %301 = vrot.lane.b32.xlu0 %v298, 64
    %v302 = vpop.permute.xlu0 %301
    %v304 = vmul.f32 %v297, %v302
    %306 = vrot.lane.b32.xlu0 %v304, 32
    %v307 = vpop.permute.xlu0 %306
    %v309 = vadd.f32 %v299, %v307
    %v310 = vtanh.pop %v309
    %312 = vrot.lane.b32.xlu0 %v310, 64
    %v313 = vpop.permute.xlu0 %312
    %v315 = vmul.f32 %v297, %v313
    %vm316 = vcmp.gt.s32.totalorder %v151, 1
    %v317 = vsel %vm316, 1, 0
    %318 = vset.pattern.permute.xlu0 0
    %319 = vperm.xlu0 %318, %v317
    %v320 = vpop.permute.xlu0 %319
    %vm321 = vcmp.eq.s32.totalorder %v320, 1
    %v322 = vsel %vm321, %v315, %v242
    %v323 = vsel %vm321, %v309, %v243
    %v324 = vpack.c.bf16 %v322, %v322
    %326 = vrot.lane.b32.xlu0 %v324, 32
    %v327 = vpop.permute.xlu0 %326
    %v329 = vsel %vm73, %v327, 0
    %331 = vmatprep.subr.bf16.mxu0 0
    %332 = vmatpush1.bf16.msra.mxu0 %v164
    %333 = vmatprep.subr.bf16.mxu0 0
    %334 = vmatpush1.bf16.msra.mxu0 %v165
    %335 = vmatprep.subr.bf16.mxu0 0
    %336 = vmatpush1.bf16.msra.mxu0 0
    %337 = vmatprep.subr.bf16.mxu0 0
    %338 = vmatpush1.bf16.msra.mxu0 0
    %339 = vmatprep.subr.bf16.mxu0 0
    %340 = vmatpush1.bf16.msra.mxu0 0
    %341 = vmatprep.subr.bf16.mxu0 0
    %342 = vmatpush1.bf16.msra.mxu0 0
    %343 = vmatprep.subr.bf16.mxu0 0
    %344 = vmatpush1.bf16.msra.mxu0 0
    %345 = vmatprep.subr.bf16.mxu0 0
    %346 = vmatpush1.bf16.msra.mxu0 0
    %347 = vmatprep.subr.bf16.mxu0 0
    %348 = vmatpush1.bf16.msra.mxu0 0
    %349 = vmatprep.subr.bf16.mxu0 0
    %350 = vmatpush1.bf16.msra.mxu0 0
    %351 = vmatprep.subr.bf16.mxu0 0
    %352 = vmatpush1.bf16.msra.mxu0 0
    %353 = vmatprep.subr.bf16.mxu0 0
    %354 = vmatpush1.bf16.msra.mxu0 0
    %355 = vmatprep.subr.bf16.mxu0 0
    %356 = vmatpush1.bf16.msra.mxu0 0
    %357 = vmatprep.subr.bf16.mxu0 0
    %358 = vmatpush1.bf16.msra.mxu0 0
    %359 = vmatprep.subr.bf16.mxu0 0
    %360 = vmatpush1.bf16.msra.mxu0 0
    %361 = vmatprep.subr.bf16.mxu0 0
    %362 = vmatpush1.bf16.msra.mxu0 0
    %363 = vmatprep.mubr.bf16.mxu0 0
    %364 = vmatmul.mubr.bf16.gmra.mrb[0].mxu0 %v329
    %v365 = vpop.f32.mrb[0].mxu0
    %v366 = vadd.f32 0.0, %v365
    %v367 = vpop.f32.mrb[0].mxu0
    %v368 = vpop.f32.mrb[0].mxu0
    %v369 = vpop.f32.mrb[0].mxu0
    %370 = vdwg.mxu0
    %v371 = vadd.f32 %v129, %v366
    %v372 = vxor.u32 %v371, 2147483648
    %v373 = vmul.f32 %v372, 1.442695
    %v374 = vpow.pop %v373
    %v375 = vadd.f32 %v374, 1.0
    %v376 = vrcp.pop %v375
    %v377 = vmul.f32 1.0, %v376
    %v378 = vtanh.pop %v371
    %v379 = vmul.f32 %v377, %v323
    %381 = vrot.lane.b32.xlu0 %v378, 64
    %v382 = vpop.permute.xlu0 %381
    %v384 = vmul.f32 %v377, %v382
    %386 = vrot.lane.b32.xlu0 %v384, 32
    %v387 = vpop.permute.xlu0 %386
    %v389 = vadd.f32 %v379, %v387
    %v390 = vtanh.pop %v389
    %392 = vrot.lane.b32.xlu0 %v390, 64
    %v393 = vpop.permute.xlu0 %392
    %v395 = vmul.f32 %v377, %v393
    %vm396 = vcmp.gt.s32.totalorder %v151, 2
    %v397 = vsel %vm396, 1, 0
    %398 = vset.pattern.permute.xlu0 0
    %399 = vperm.xlu0 %398, %v397
    %v400 = vpop.permute.xlu0 %399
    %vm401 = vcmp.eq.s32.totalorder %v400, 1
    %v402 = vsel %vm401, %v395, %v322
    %v403 = vsel %vm401, %v389, %v323
    %v404 = vpack.c.bf16 %v402, %v402
    %406 = vrot.lane.b32.xlu0 %v404, 32
    %v407 = vpop.permute.xlu0 %406
    %v409 = vsel %vm73, %v407, 0
    %411 = vmatprep.subr.bf16.mxu0 0
    %412 = vmatpush1.bf16.msra.mxu0 %v164
    %413 = vmatprep.subr.bf16.mxu0 0
    %414 = vmatpush1.bf16.msra.mxu0 %v165
    %415 = vmatprep.subr.bf16.mxu0 0
    %416 = vmatpush1.bf16.msra.mxu0 0
    %417 = vmatprep.subr.bf16.mxu0 0
    %418 = vmatpush1.bf16.msra.mxu0 0
    %419 = vmatprep.subr.bf16.mxu0 0
    %420 = vmatpush1.bf16.msra.mxu0 0
    %421 = vmatprep.subr.bf16.mxu0 0
    %422 = vmatpush1.bf16.msra.mxu0 0
    %423 = vmatprep.subr.bf16.mxu0 0
    %424 = vmatpush1.bf16.msra.mxu0 0
    %425 = vmatprep.subr.bf16.mxu0 0
    %426 = vmatpush1.bf16.msra.mxu0 0
    %427 = vmatprep.subr.bf16.mxu0 0
    %428 = vmatpush1.bf16.msra.mxu0 0
    %429 = vmatprep.subr.bf16.mxu0 0
    %430 = vmatpush1.bf16.msra.mxu0 0
    %431 = vmatprep.subr.bf16.mxu0 0
    %432 = vmatpush1.bf16.msra.mxu0 0
    %433 = vmatprep.subr.bf16.mxu0 0
    %434 = vmatpush1.bf16.msra.mxu0 0
    %435 = vmatprep.subr.bf16.mxu0 0
    %436 = vmatpush1.bf16.msra.mxu0 0
    %437 = vmatprep.subr.bf16.mxu0 0
    %438 = vmatpush1.bf16.msra.mxu0 0
    %439 = vmatprep.subr.bf16.mxu0 0
    %440 = vmatpush1.bf16.msra.mxu0 0
    %441 = vmatprep.subr.bf16.mxu0 0
    %442 = vmatpush1.bf16.msra.mxu0 0
    %443 = vmatprep.mubr.bf16.mxu0 0
    %444 = vmatmul.mubr.bf16.gmra.mrb[0].mxu0 %v409
    %v445 = vpop.f32.mrb[0].mxu0
    %v446 = vadd.f32 0.0, %v445
    %v447 = vpop.f32.mrb[0].mxu0
    %v448 = vpop.f32.mrb[0].mxu0
    %v449 = vpop.f32.mrb[0].mxu0
    %450 = vdwg.mxu0
    %v451 = vadd.f32 %v132, %v446
    %v452 = vxor.u32 %v451, 2147483648
    %v453 = vmul.f32 %v452, 1.442695
    %v454 = vpow.pop %v453
    %v455 = vadd.f32 %v454, 1.0
    %v456 = vrcp.pop %v455
    %v457 = vmul.f32 1.0, %v456
    %v458 = vtanh.pop %v451
    %v459 = vmul.f32 %v457, %v403
    %461 = vrot.lane.b32.xlu0 %v458, 64
    %v462 = vpop.permute.xlu0 %461
    %v464 = vmul.f32 %v457, %v462
    %466 = vrot.lane.b32.xlu0 %v464, 32
    %v467 = vpop.permute.xlu0 %466
    %v469 = vadd.f32 %v459, %v467
    %v470 = vtanh.pop %v469
    %472 = vrot.lane.b32.xlu0 %v470, 64
    %v473 = vpop.permute.xlu0 %472
    %v475 = vmul.f32 %v457, %v473
    %vm476 = vcmp.gt.s32.totalorder %v151, 3
    %v477 = vsel %vm476, 1, 0
    %478 = vset.pattern.permute.xlu0 0
    %479 = vperm.xlu0 %478, %v477
    %v480 = vpop.permute.xlu0 %479
    %vm481 = vcmp.eq.s32.totalorder %v480, 1
    %v482 = vsel %vm481, %v475, %v402
    %v483 = vsel %vm481, %v469, %v403
    %v484 = vpack.c.bf16 %v482, %v482
    %486 = vrot.lane.b32.xlu0 %v484, 32
    %v487 = vpop.permute.xlu0 %486
    %v489 = vsel %vm73, %v487, 0
    %491 = vmatprep.subr.bf16.mxu0 0
    %492 = vmatpush1.bf16.msra.mxu0 %v164
    %493 = vmatprep.subr.bf16.mxu0 0
    %494 = vmatpush1.bf16.msra.mxu0 %v165
    %495 = vmatprep.subr.bf16.mxu0 0
    %496 = vmatpush1.bf16.msra.mxu0 0
    %497 = vmatprep.subr.bf16.mxu0 0
    %498 = vmatpush1.bf16.msra.mxu0 0
    %499 = vmatprep.subr.bf16.mxu0 0
    %500 = vmatpush1.bf16.msra.mxu0 0
    %501 = vmatprep.subr.bf16.mxu0 0
    %502 = vmatpush1.bf16.msra.mxu0 0
    %503 = vmatprep.subr.bf16.mxu0 0
    %504 = vmatpush1.bf16.msra.mxu0 0
    %505 = vmatprep.subr.bf16.mxu0 0
    %506 = vmatpush1.bf16.msra.mxu0 0
    %507 = vmatprep.subr.bf16.mxu0 0
    %508 = vmatpush1.bf16.msra.mxu0 0
    %509 = vmatprep.subr.bf16.mxu0 0
    %510 = vmatpush1.bf16.msra.mxu0 0
    %511 = vmatprep.subr.bf16.mxu0 0
    %512 = vmatpush1.bf16.msra.mxu0 0
    %513 = vmatprep.subr.bf16.mxu0 0
    %514 = vmatpush1.bf16.msra.mxu0 0
    %515 = vmatprep.subr.bf16.mxu0 0
    %516 = vmatpush1.bf16.msra.mxu0 0
    %517 = vmatprep.subr.bf16.mxu0 0
    %518 = vmatpush1.bf16.msra.mxu0 0
    %519 = vmatprep.subr.bf16.mxu0 0
    %520 = vmatpush1.bf16.msra.mxu0 0
    %521 = vmatprep.subr.bf16.mxu0 0
    %522 = vmatpush1.bf16.msra.mxu0 0
    %523 = vmatprep.mubr.bf16.mxu0 0
    %524 = vmatmul.mubr.bf16.gmra.mrb[0].mxu0 %v489
    %v525 = vpop.f32.mrb[0].mxu0
    %v526 = vadd.f32 0.0, %v525
    %v527 = vpop.f32.mrb[0].mxu0
    %v528 = vpop.f32.mrb[0].mxu0
    %v529 = vpop.f32.mrb[0].mxu0
    %530 = vdwg.mxu0
    %v531 = vadd.f32 %v137, %v526
    %v532 = vxor.u32 %v531, 2147483648
    %v533 = vmul.f32 %v532, 1.442695
    %v534 = vpow.pop %v533
    %v535 = vadd.f32 %v534, 1.0
    %v536 = vrcp.pop %v535
    %v537 = vmul.f32 1.0, %v536
    %v538 = vtanh.pop %v531
    %v539 = vmul.f32 %v537, %v483
    %541 = vrot.lane.b32.xlu0 %v538, 64
    %v542 = vpop.permute.xlu0 %541
    %v544 = vmul.f32 %v537, %v542
    %546 = vrot.lane.b32.xlu0 %v544, 32
    %v547 = vpop.permute.xlu0 %546
    %v549 = vadd.f32 %v539, %v547
    %v550 = vtanh.pop %v549
    %552 = vrot.lane.b32.xlu0 %v550, 64
    %v553 = vpop.permute.xlu0 %552
    %v555 = vmul.f32 %v537, %v553
    %vm556 = vcmp.gt.s32.totalorder %v151, 4
    %v557 = vsel %vm556, 1, 0
    %558 = vset.pattern.permute.xlu0 0
    %559 = vperm.xlu0 %558, %v557
    %v560 = vpop.permute.xlu0 %559
    %vm561 = vcmp.eq.s32.totalorder %v560, 1
    %v562 = vsel %vm561, %v555, %v482
    %v563 = vsel %vm561, %v549, %v483
    %v564 = vpack.c.bf16 %v562, %v562
    %566 = vrot.lane.b32.xlu0 %v564, 32
    %v567 = vpop.permute.xlu0 %566
    %v569 = vsel %vm73, %v567, 0
    %571 = vmatprep.subr.bf16.mxu0 0
    %572 = vmatpush1.bf16.msra.mxu0 %v164
    %573 = vmatprep.subr.bf16.mxu0 0
    %574 = vmatpush1.bf16.msra.mxu0 %v165
    %575 = vmatprep.subr.bf16.mxu0 0
    %576 = vmatpush1.bf16.msra.mxu0 0
    %577 = vmatprep.subr.bf16.mxu0 0
    %578 = vmatpush1.bf16.msra.mxu0 0
    %579 = vmatprep.subr.bf16.mxu0 0
    %580 = vmatpush1.bf16.msra.mxu0 0
    %581 = vmatprep.subr.bf16.mxu0 0
    %582 = vmatpush1.bf16.msra.mxu0 0
    %583 = vmatprep.subr.bf16.mxu0 0
    %584 = vmatpush1.bf16.msra.mxu0 0
    %585 = vmatprep.subr.bf16.mxu0 0
    %586 = vmatpush1.bf16.msra.mxu0 0
    %587 = vmatprep.subr.bf16.mxu0 0
    %588 = vmatpush1.bf16.msra.mxu0 0
    %589 = vmatprep.subr.bf16.mxu0 0
    %590 = vmatpush1.bf16.msra.mxu0 0
    %591 = vmatprep.subr.bf16.mxu0 0
    %592 = vmatpush1.bf16.msra.mxu0 0
    %593 = vmatprep.subr.bf16.mxu0 0
    %594 = vmatpush1.bf16.msra.mxu0 0
    %595 = vmatprep.subr.bf16.mxu0 0
    %596 = vmatpush1.bf16.msra.mxu0 0
    %597 = vmatprep.subr.bf16.mxu0 0
    %598 = vmatpush1.bf16.msra.mxu0 0
    %599 = vmatprep.subr.bf16.mxu0 0
    %600 = vmatpush1.bf16.msra.mxu0 0
    %601 = vmatprep.subr.bf16.mxu0 0
    %602 = vmatpush1.bf16.msra.mxu0 0
    %603 = vmatprep.mubr.bf16.mxu0 0
    %604 = vmatmul.mubr.bf16.gmra.mrb[0].mxu0 %v569
    %v605 = vpop.f32.mrb[0].mxu0
    %v606 = vadd.f32 0.0, %v605
    %v607 = vpop.f32.mrb[0].mxu0
    %v608 = vpop.f32.mrb[0].mxu0
    %v609 = vpop.f32.mrb[0].mxu0
    %610 = vdwg.mxu0
    %v611 = vadd.f32 %v140, %v606
    %v612 = vxor.u32 %v611, 2147483648
    %v613 = vmul.f32 %v612, 1.442695
    %v614 = vpow.pop %v613
    %v615 = vadd.f32 %v614, 1.0
    %v616 = vrcp.pop %v615
    %v617 = vmul.f32 1.0, %v616
    %v618 = vtanh.pop %v611
    %v619 = vmul.f32 %v617, %v563
    %621 = vrot.lane.b32.xlu0 %v618, 64
    %v622 = vpop.permute.xlu0 %621
    %v624 = vmul.f32 %v617, %v622
    %626 = vrot.lane.b32.xlu0 %v624, 32
    %v627 = vpop.permute.xlu0 %626
    %v629 = vadd.f32 %v619, %v627
    %v630 = vtanh.pop %v629
    %632 = vrot.lane.b32.xlu0 %v630, 64
    %v633 = vpop.permute.xlu0 %632
    %v635 = vmul.f32 %v617, %v633
    %vm636 = vcmp.gt.s32.totalorder %v151, 5
    %v637 = vsel %vm636, 1, 0
    %638 = vset.pattern.permute.xlu0 0
    %639 = vperm.xlu0 %638, %v637
    %v640 = vpop.permute.xlu0 %639
    %vm641 = vcmp.eq.s32.totalorder %v640, 1
    %v642 = vsel %vm641, %v635, %v562
    %v643 = vsel %vm641, %v629, %v563
    %v644 = vpack.c.bf16 %v642, %v642
    %646 = vrot.lane.b32.xlu0 %v644, 32
    %v647 = vpop.permute.xlu0 %646
    %v649 = vsel %vm73, %v647, 0
    %651 = vmatprep.subr.bf16.mxu0 0
    %652 = vmatpush1.bf16.msra.mxu0 %v164
    %653 = vmatprep.subr.bf16.mxu0 0
    %654 = vmatpush1.bf16.msra.mxu0 %v165
    %655 = vmatprep.subr.bf16.mxu0 0
    %656 = vmatpush1.bf16.msra.mxu0 0
    %657 = vmatprep.subr.bf16.mxu0 0
    %658 = vmatpush1.bf16.msra.mxu0 0
    %659 = vmatprep.subr.bf16.mxu0 0
    %660 = vmatpush1.bf16.msra.mxu0 0
    %661 = vmatprep.subr.bf16.mxu0 0
    %662 = vmatpush1.bf16.msra.mxu0 0
    %663 = vmatprep.subr.bf16.mxu0 0
    %664 = vmatpush1.bf16.msra.mxu0 0
    %665 = vmatprep.subr.bf16.mxu0 0
    %666 = vmatpush1.bf16.msra.mxu0 0
    %667 = vmatprep.subr.bf16.mxu0 0
    %668 = vmatpush1.bf16.msra.mxu0 0
    %669 = vmatprep.subr.bf16.mxu0 0
    %670 = vmatpush1.bf16.msra.mxu0 0
    %671 = vmatprep.subr.bf16.mxu0 0
    %672 = vmatpush1.bf16.msra.mxu0 0
    %673 = vmatprep.subr.bf16.mxu0 0
    %674 = vmatpush1.bf16.msra.mxu0 0
    %675 = vmatprep.subr.bf16.mxu0 0
    %676 = vmatpush1.bf16.msra.mxu0 0
    %677 = vmatprep.subr.bf16.mxu0 0
    %678 = vmatpush1.bf16.msra.mxu0 0
    %679 = vmatprep.subr.bf16.mxu0 0
    %680 = vmatpush1.bf16.msra.mxu0 0
    %681 = vmatprep.subr.bf16.mxu0 0
    %682 = vmatpush1.bf16.msra.mxu0 0
    %683 = vmatprep.mubr.bf16.mxu0 0
    %684 = vmatmul.mubr.bf16.gmra.mrb[0].mxu0 %v649
    %v685 = vpop.f32.mrb[0].mxu0
    %v686 = vadd.f32 0.0, %v685
    %v687 = vpop.f32.mrb[0].mxu0
    %v688 = vpop.f32.mrb[0].mxu0
    %v689 = vpop.f32.mrb[0].mxu0
    %690 = vdwg.mxu0
    %v691 = vadd.f32 %v145, %v686
    %v692 = vxor.u32 %v691, 2147483648
    %v693 = vmul.f32 %v692, 1.442695
    %v694 = vpow.pop %v693
    %v695 = vadd.f32 %v694, 1.0
    %v696 = vrcp.pop %v695
    %v697 = vmul.f32 1.0, %v696
    %v698 = vtanh.pop %v691
    %v699 = vmul.f32 %v697, %v643
    %701 = vrot.lane.b32.xlu0 %v698, 64
    %v702 = vpop.permute.xlu0 %701
    %v704 = vmul.f32 %v697, %v702
    %706 = vrot.lane.b32.xlu0 %v704, 32
    %v707 = vpop.permute.xlu0 %706
    %v709 = vadd.f32 %v699, %v707
    %v710 = vtanh.pop %v709
    %712 = vrot.lane.b32.xlu0 %v710, 64
    %v713 = vpop.permute.xlu0 %712
    %v715 = vmul.f32 %v697, %v713
    %vm716 = vcmp.gt.s32.totalorder %v151, 6
    %v717 = vsel %vm716, 1, 0
    %718 = vset.pattern.permute.xlu0 0
    %719 = vperm.xlu0 %718, %v717
    %v720 = vpop.permute.xlu0 %719
    %vm721 = vcmp.eq.s32.totalorder %v720, 1
    %v722 = vsel %vm721, %v715, %v642
    %v723 = vsel %vm721, %v709, %v643
    %v724 = vpack.c.bf16 %v722, %v722
    %726 = vrot.lane.b32.xlu0 %v724, 32
    %v727 = vpop.permute.xlu0 %726
    %v729 = vsel %vm73, %v727, 0
    %731 = vmatprep.subr.bf16.mxu0 0
    %732 = vmatpush1.bf16.msra.mxu0 %v164
    %733 = vmatprep.subr.bf16.mxu0 0
    %734 = vmatpush1.bf16.msra.mxu0 %v165
    %735 = vmatprep.subr.bf16.mxu0 0
    %736 = vmatpush1.bf16.msra.mxu0 0
    %737 = vmatprep.subr.bf16.mxu0 0
    %738 = vmatpush1.bf16.msra.mxu0 0
    %739 = vmatprep.subr.bf16.mxu0 0
    %740 = vmatpush1.bf16.msra.mxu0 0
    %741 = vmatprep.subr.bf16.mxu0 0
    %742 = vmatpush1.bf16.msra.mxu0 0
    %743 = vmatprep.subr.bf16.mxu0 0
    %744 = vmatpush1.bf16.msra.mxu0 0
    %745 = vmatprep.subr.bf16.mxu0 0
    %746 = vmatpush1.bf16.msra.mxu0 0
    %747 = vmatprep.subr.bf16.mxu0 0
    %748 = vmatpush1.bf16.msra.mxu0 0
    %749 = vmatprep.subr.bf16.mxu0 0
    %750 = vmatpush1.bf16.msra.mxu0 0
    %751 = vmatprep.subr.bf16.mxu0 0
    %752 = vmatpush1.bf16.msra.mxu0 0
    %753 = vmatprep.subr.bf16.mxu0 0
    %754 = vmatpush1.bf16.msra.mxu0 0
    %755 = vmatprep.subr.bf16.mxu0 0
    %756 = vmatpush1.bf16.msra.mxu0 0
    %757 = vmatprep.subr.bf16.mxu0 0
    %758 = vmatpush1.bf16.msra.mxu0 0
    %759 = vmatprep.subr.bf16.mxu0 0
    %760 = vmatpush1.bf16.msra.mxu0 0
    %761 = vmatprep.subr.bf16.mxu0 0
    %762 = vmatpush1.bf16.msra.mxu0 0
    %763 = vmatprep.mubr.bf16.mxu0 0
    %764 = vmatmul.mubr.bf16.gmra.mrb[0].mxu0 %v729
    %v765 = vpop.f32.mrb[0].mxu0
    %v766 = vadd.f32 0.0, %v765
    %v767 = vpop.f32.mrb[0].mxu0
    %v768 = vpop.f32.mrb[0].mxu0
    %v769 = vpop.f32.mrb[0].mxu0
    %770 = vdwg.mxu0
    %v771 = vadd.f32 %v148, %v766
    %v772 = vxor.u32 %v771, 2147483648
    %v773 = vmul.f32 %v772, 1.442695
    %v774 = vpow.pop %v773
    %v775 = vadd.f32 %v774, 1.0
    %v776 = vrcp.pop %v775
    %v777 = vmul.f32 1.0, %v776
    %v778 = vtanh.pop %v771
    %v779 = vmul.f32 %v777, %v723
    %781 = vrot.lane.b32.xlu0 %v778, 64
    %v782 = vpop.permute.xlu0 %781
    %v784 = vmul.f32 %v777, %v782
    %786 = vrot.lane.b32.xlu0 %v784, 32
    %v787 = vpop.permute.xlu0 %786
    %v789 = vadd.f32 %v779, %v787
    %v790 = vtanh.pop %v789
    %792 = vrot.lane.b32.xlu0 %v790, 64
    %v793 = vpop.permute.xlu0 %792
    %v795 = vmul.f32 %v777, %v793
    %vm796 = vcmp.gt.s32.totalorder %v151, 7
    %v797 = vsel %vm796, 1, 0
    %798 = vset.pattern.permute.xlu0 0
    %799 = vperm.xlu0 %798, %v797
    %v800 = vpop.permute.xlu0 %799
    %vm801 = vcmp.eq.s32.totalorder %v800, 1
    %v802 = vsel %vm801, %v795, %v722
    %v803 = vsel %vm801, %v789, %v723
    %805 = vrot.lane.b32.xlu0 %v802, 32
    %v806 = vpop.permute.xlu0 %805
    %v808 = vsel %vm73, %v806, %v803
    %vm809 = vcmask 523264
    %v810 = vsel %vm809, %v808, 0.0
    %811 = vst [vmem:[#allocation2] sm:$0xff] %v810
    // Predicated region
    $region22: #{tpu_custom_call.1} parent=1 // pred_check
      _
    $region23: #{tpu_custom_call.1} parent=1 // pred_check_branch
      %813 = sbr.rel (0) target = $region25
    $region24: #{tpu_custom_call.1} parent=1 // pred_region
      %s815 = ssub.s32 128, 128
      %816 = vsyncadd [#allocation3], %s815
      %s818 = sshll.u32 [#allocation2], 4
      %s819 = int_to_ptr.vmem [resolvable:$true] %s818
      %821 = dma.vmem_to_hbm [thread:$0]  %s819, 128, %s5, [#allocation3]
    $region25: #{tpu_custom_call.1} parent=1 // pred_fallthru
      _
    // Predicated region
    $region26: #{tpu_custom_call.1} parent=1 // pred_check
      _
    $region27: #{tpu_custom_call.1} parent=1 // pred_check_branch
      %823 = sbr.rel (0) target = $region29
    $region28: #{tpu_custom_call.1} parent=1 // pred_region
      %824 = dma.done [#allocation3], 128
    $region29: #{tpu_custom_call.1} parent=1 // pred_fallthru
      _
    %825 = vsyncpa [#allocation3], 1

</llo_original>
